<compile_context>
chip_gen: v5e
topology: v5e:2x2
jax: 0.10.0
libtpu: 0.0.40
codegen_flags: <defaults>
</compile_context>

<pallas_src>
import jax
import jax.numpy as jnp
from jax.experimental import pallas as pl
from jax.experimental.pallas import tpu as pltpu

f32 = jnp.float32
bf16 = jnp.bfloat16


def _round_up(v, m):
    return (v + m - 1) // m * m


def _pad2d(a, rows, cols):
    r, c = a.shape
    if (r, c) == (rows, cols):
        return a
    return jnp.pad(a, ((0, rows - r), (0, cols - c)))


def _silu(v):
    # SiLU via tanh: v * sigmoid(v) == v * 0.5 * (1 + tanh(v / 2)).
    # One EUP op per element, numerically stable for all v (tanh saturates;
    # no exp overflow and no approximate-reciprocal error in the f32 output).
    return v * (0.5 * jnp.tanh(0.5 * v) + 0.5)


def _vmem_capacity_bytes():
    try:
        return int(pltpu.get_tpu_info().vmem_capacity_bytes)
    except Exception:
        return 64 << 20  # conservative default: v7x per-TensorCore VMEM


def _single_buffered_spec(shape, index_map):
    # Grid-invariant operand: one VMEM buffer suffices (constant index_map ->
    # DMA'd once, never re-fetched).  Fall back to default double-buffering on
    # jax versions without the pipeline_mode kwarg / pl.Buffered.
    try:
        return pl.BlockSpec(shape, index_map, pipeline_mode=pl.Buffered(1))
    except Exception:
        return pl.BlockSpec(shape, index_map)


# ----------------------------------------------------------------------------
# Kernels
# ----------------------------------------------------------------------------

def _resident_kernel(x_ref, w1_ref, b1_ref, w2_ref, b2_ref, o_ref):
    """Weights VMEM-resident; one batch tile per grid step."""
    x = x_ref[...].astype(f32)            # (TN, D) f32 — full-precision residual
    x16 = x.astype(bf16)                  # MXU operand

    # h = SiLU(x @ W1^T + b1): bf16 MXU matmul, f32 accumulate, f32 elementwise.
    h = jnp.dot(x16, w1_ref[...], preferred_element_type=f32) + b1_ref[...]
    h = _silu(h)

    # out = SiLU((h @ W2^T + b2) + identity)
    out = jnp.dot(h.astype(bf16), w2_ref[...], preferred_element_type=f32)
    out = out + b2_ref[...] + x
    o_ref[...] = _silu(out).astype(o_ref.dtype)


def _tiled_kernel(x_ref, w1_ref, b1_ref, w2_ref, b2_ref, o_ref, acc_ref):
    """Large-D fallback: grid axis 1 tiles the hidden dimension; the second
    matmul accumulates into an f32 VMEM scratch (weights streamed, not resident)."""
    j = pl.program_id(1)

    @pl.when(j == 0)
    def _():
        acc_ref[...] = jnp.zeros_like(acc_ref)

    x = x_ref[...].astype(f32)
    x16 = x.astype(bf16)

    # Hidden-column block j of layer 1 (exact: SiLU is elementwise per hidden unit).
    h = jnp.dot(x16, w1_ref[...], preferred_element_type=f32) + b1_ref[...]
    h = _silu(h)

    # Accumulate this hidden block's contribution to the second matmul.
    acc_ref[...] += jnp.dot(h.astype(bf16), w2_ref[...], preferred_element_type=f32)

    @pl.when(j == pl.num_programs(1) - 1)
    def _():
        out = acc_ref[...] + b2_ref[...] + x
        o_ref[...] = _silu(out).astype(o_ref.dtype)


# ----------------------------------------------------------------------------
# Host-side wrapper
# ----------------------------------------------------------------------------

def _feature_pad(d):
    # Lane-dense blocks.  For large D (compute-bound regime on v6e/v7x) align to
    # the 256-wide MXU; small D keeps 128 alignment (minimal padded flops, and
    # v5e's 4x128x128 MXU is already optimal at 128).
    d_pad = _round_up(d, 128)
    if d >= 512 and d_pad % 256 != 0:
        d_pad = _round_up(d, 256)
    return d_pad


def prepare_params(w1, b1, w2, b2):
    """One-time weight prep: transpose to y = x @ W layout, bf16 cast, zero-pad.

    Hoist this out of any per-step loop (it moves ~6*D^2 bytes); the zero
    padding is exact for this block (SiLU(0)=0, padded rows/cols/bias are 0).
    """
    d = w1.shape[0]
    assert w1.shape == (d, d) and w2.shape == (d, d)
    assert b1.shape == (d,) and b2.shape == (d,)
    d_pad = _feature_pad(d)
    return dict(
        d=d,
        d_pad=d_pad,
        w1=_pad2d(w1.T.astype(bf16), d_pad, d_pad),
        w2=_pad2d(w2.T.astype(bf16), d_pad, d_pad),
        b1=_pad2d(b1.reshape(1, d).astype(f32), 1, d_pad),
        b2=_pad2d(b2.reshape(1, d).astype(f32), 1, d_pad),
    )


def _resident_vmem_bytes(tn, d_pad):
    return (2 * tn * d_pad * 4          # x block (f32, double-buffered)
            + 2 * tn * d_pad * 4        # out block (f32, double-buffered)
            + 2 * d_pad * d_pad * 2     # W1 + W2 (bf16, single-buffered)
            + 2 * 8 * d_pad * 4         # b1 + b2 (f32, sublane-padded, single-buffered)
            + 16 * tn * d_pad)          # intermediates: f32 h, bf16 x/h copies, f32 out


def _tiled_vmem_bytes(tn, tj, d_pad):
    return (2 * tn * d_pad * 4          # x block (f32)
            + 2 * tn * d_pad * 4        # out block (f32)
            + tn * d_pad * 4            # f32 accumulator scratch
            + 2 * d_pad * tj * 2        # W1 column block (bf16, double-buffered)
            + 2 * tj * d_pad * 2        # W2 row block (bf16, double-buffered)
            + 2 * 8 * tj * 4 + 2 * 8 * d_pad * 4   # bias blocks
            + 8 * tn * tj + 8 * tn * d_pad)        # intermediates


def residual_block_apply(x, params, *, row_tile=512, col_tile=512, force_tiled=False):
    """x: (N, D) f32; params from prepare_params()."""
    n, d = x.shape
    assert d == params["d"]
    d_pad = params["d_pad"]
    w1_p, b1_p, w2_p, b2_p = params["w1"], params["b1"], params["w2"], params["b2"]

    vmem_cap = _vmem_capacity_bytes()
    budget = int(0.75 * vmem_cap)

    # Row tile: >=128 rows per MXU call, aiming for >=4 grid steps so the batch
    # grid pipelines and (on v7x) "parallel" can feed both TensorCores.
    tn = min(_round_up(row_tile, 128), max(128, _round_up(pl.cdiv(n, 4), 128)))

    # Shrink the row tile before abandoning VMEM-resident weights.
    while tn > 128 and _resident_vmem_bytes(tn, d_pad) > budget:
        tn = max(128, _round_up(tn // 2, 128))
    use_tiled = force_tiled or _resident_vmem_bytes(tn, d_pad) > budget

    if use_tiled:
        # Hidden-dimension tile for the fallback path.
        tj = min(_round_up(col_tile, 128), d_pad)
        while (tj > 128 or tn > 128) and _tiled_vmem_bytes(tn, tj, d_pad) > budget:
            if tj >= tn and tj > 128:
                tj = max(128, _round_up(tj // 2, 128))
            else:
                tn = max(128, _round_up(tn // 2, 128))
        while d_pad % tj:          # blocks must tile d_pad exactly
            tj -= 128

    n_pad = _round_up(n, tn)
    # Skip host-side prep entirely when already aligned (common trained-model case).
    x_p = x if (n_pad == n and d_pad == d) else jnp.pad(x, ((0, n_pad - n), (0, d_pad - d)))

    itemsize = x.dtype.itemsize
    flops = 4 * n_pad * d_pad * d_pad                 # two (tn,D)x(D,D) matmuls
    transcendentals = 2 * n_pad * d_pad               # one tanh per SiLU, two SiLUs
    bytes_accessed = (2 * n_pad * d_pad * itemsize    # x read + out write
                      + 2 * d_pad * d_pad * 2         # W1 + W2 (bf16)
                      + 2 * d_pad * 4)                # biases
    cost = pl.CostEstimate(flops=flops, transcendentals=transcendentals,
                           bytes_accessed=bytes_accessed)

    if not use_tiled:
        grid = (n_pad // tn,)
        row_spec = pl.BlockSpec((tn, d_pad), lambda i: (i, 0))
        needed = _resident_vmem_bytes(tn, d_pad)
        vmem_limit = int(min(vmem_cap, max(needed + (8 << 20), 32 << 20)))
        out_p = pl.pallas_call(
            _resident_kernel,
            out_shape=jax.ShapeDtypeStruct((n_pad, d_pad), x.dtype),
            grid_spec=pltpu.PrefetchScalarGridSpec(
                num_scalar_prefetch=0,
                grid=grid,
                in_specs=[
                    row_spec,                                              # x tile (streamed)
                    _single_buffered_spec((d_pad, d_pad), lambda i: (0, 0)),  # W1^T resident
                    _single_buffered_spec((1, d_pad), lambda i: (0, 0)),       # b1 resident
                    _single_buffered_spec((d_pad, d_pad), lambda i: (0, 0)),  # W2^T resident
                    _single_buffered_spec((1, d_pad), lambda i: (0, 0)),       # b2 resident
                ],
                out_specs=row_spec,
            ),
            compiler_params=pltpu.CompilerParams(
                dimension_semantics=("parallel",),
                vmem_limit_bytes=vmem_limit,
            ),
            cost_estimate=cost,
        )(x_p, w1_p, b1_p, w2_p, b2_p)
    else:
        grid = (n_pad // tn, d_pad // tj)
        needed = _tiled_vmem_bytes(tn, tj, d_pad)
        vmem_limit = int(min(vmem_cap, max(needed + (8 << 20), 32 << 20)))
        out_p = pl.pallas_call(
            _tiled_kernel,
            out_shape=jax.ShapeDtypeStruct((n_pad, d_pad), x.dtype),
            grid_spec=pltpu.PrefetchScalarGridSpec(
                num_scalar_prefetch=0,
                grid=grid,
                in_specs=[
                    pl.BlockSpec((tn, d_pad), lambda i, j: (i, 0)),   # x tile (constant over j)
                    pl.BlockSpec((d_pad, tj), lambda i, j: (0, j)),   # W1^T column block
                    pl.BlockSpec((1, tj), lambda i, j: (0, j)),       # b1 block
                    pl.BlockSpec((tj, d_pad), lambda i, j: (j, 0)),   # W2^T row block
                    pl.BlockSpec((1, d_pad), lambda i, j: (0, 0)),    # b2
                ],
                out_specs=pl.BlockSpec((tn, d_pad), lambda i, j: (i, 0)),
                scratch_shapes=[pltpu.VMEM((tn, d_pad), jnp.float32)],
            ),
            compiler_params=pltpu.CompilerParams(
                dimension_semantics=("parallel", "arbitrary"),
                vmem_limit_bytes=vmem_limit,
            ),
            cost_estimate=cost,
        )(x_p, w1_p, b1_p, w2_p, b2_p)

    return out_p[:n, :d]


def residual_block(x, w1, b1, w2, b2, **kwargs):
    """Convenience wrapper: x (N, D) f32; w1/w2 (D, D) in nn.Linear layout
    (y = x @ W.T + b); b1/b2 (D,).  For repeated calls, hoist prepare_params()."""
    return residual_block_apply(x, prepare_params(w1, b1, w2, b2), **kwargs)


def reference(x, w1, b1, w2, b2):
    """Pure-JAX reference mirroring the kernel's bf16 MXU-operand quantization;
    the residual identity is the full-precision f32 x (as in the PyTorch module)."""
    xq = x.astype(bf16).astype(f32)
    w1q = w1.T.astype(bf16).astype(f32)
    w2q = w2.T.astype(bf16).astype(f32)
    h = xq @ w1q + b1.astype(f32)
    h = h * jax.nn.sigmoid(h)
    hq = h.astype(bf16).astype(f32)
    out = hq @ w2q + b2.astype(f32) + x.astype(f32)
    return out * jax.nn.sigmoid(out)


if __name__ == "__main__":
    def make_inputs(key, batch, dim):
        kx, kw1, kb1, kw2, kb2 = jax.random.split(key, 5)
        bound = 1.0 / (dim ** 0.5)
        x = jax.random.normal(kx, (batch, dim), dtype=jnp.float32)
        w1 = jax.random.uniform(kw1, (dim, dim), minval=-bound, maxval=bound, dtype=jnp.float32)
        b1 = jax.random.uniform(kb1, (dim,), minval=-bound, maxval=bound, dtype=jnp.float32)
        w2 = jax.random.uniform(kw2, (dim, dim), minval=-bound, maxval=bound, dtype=jnp.float32)
        b2 = jax.random.uniform(kb2, (dim,), minval=-bound, maxval=bound, dtype=jnp.float32)
        return x, w1, b1, w2, b2

    # Main (VMEM-resident weights) path at small shapes consistent with ResidualBlock(dim).
    batch, dim = 8, 32
    x, w1, b1, w2, b2 = make_inputs(jax.random.PRNGKey(0), batch, dim)
    out = jax.block_until_ready(residual_block(x, w1, b1, w2, b2))
    ref = reference(x, w1, b1, w2, b2)
    assert out.shape == (batch, dim)
    assert jnp.allclose(out, ref, atol=5e-3, rtol=5e-3), "resident-path mismatch vs reference"

    # Large-D fallback path (hidden-dim grid axis + f32 accumulator), forced at a
    # small shape so accumulation over >= 2 hidden blocks is actually exercised.
    batch2, dim2 = 8, 160
    x2, w12, b12, w22, b22 = make_inputs(jax.random.PRNGKey(1), batch2, dim2)
    out2 = jax.block_until_ready(
        residual_block(x2, w12, b12, w22, b22, force_tiled=True, col_tile=128))
    ref2 = reference(x2, w12, b12, w22, b22)
    assert out2.shape == (batch2, dim2)
    assert jnp.allclose(out2, ref2, atol=5e-3, rtol=5e-3), "tiled-path mismatch vs reference"

    print("KERNEL_OK")
</pallas_src>

<mosaic_0001>
module attributes {stable_mosaic.version = 11 : i64} {
  func.func @_resident_kernel(%arg0: i32, %arg1: memref<128x128xf32, #tpu.memory_space<vmem>>, %arg2: memref<128x128xbf16, #tpu.memory_space<vmem>>, %arg3: memref<1x128xf32, #tpu.memory_space<vmem>>, %arg4: memref<128x128xbf16, #tpu.memory_space<vmem>>, %arg5: memref<1x128xf32, #tpu.memory_space<vmem>>, %arg6: memref<128x128xf32, #tpu.memory_space<vmem>>) attributes {dimension_semantics = [#tpu.dimension_semantics<parallel>], iteration_bounds = array<i64: 1>, scalar_prefetch = 0 : i64, scratch_operands = 0 : i64, tpu.core_type = #tpu.core_type<tc>, window_params = [{transform_indices = @transform_0, window_bounds = array<i64: 128, 128>}, {pipeline_mode = #tpu.pipeline_mode<synchronous>, transform_indices = @transform_1, window_bounds = array<i64: 128, 128>}, {pipeline_mode = #tpu.pipeline_mode<synchronous>, transform_indices = @transform_2, window_bounds = array<i64: 1, 128>}, {pipeline_mode = #tpu.pipeline_mode<synchronous>, transform_indices = @transform_3, window_bounds = array<i64: 128, 128>}, {pipeline_mode = #tpu.pipeline_mode<synchronous>, transform_indices = @transform_4, window_bounds = array<i64: 1, 128>}, {transform_indices = @transform_5, window_bounds = array<i64: 128, 128>}]} {
    %c0 = arith.constant 0 : index
    %c0_0 = arith.constant 0 : index
    %0 = vector.load %arg1[%c0, %c0_0] : memref<128x128xf32, #tpu.memory_space<vmem>>, vector<128x128xf32>
    %1 = arith.truncf %0 : vector<128x128xf32> to vector<128x128xbf16>
    %c0_1 = arith.constant 0 : index
    %c0_2 = arith.constant 0 : index
    %2 = vector.load %arg2[%c0_1, %c0_2] : memref<128x128xbf16, #tpu.memory_space<vmem>>, vector<128x128xbf16>
    %cst = arith.constant dense<0.000000e+00> : vector<128x128xf32>
    %3 = tpu.matmul %1, %2, %cst {dimension_numbers = #tpu.dot_dimension_numbers<[1], [0], [0], [1], [0, 0, 1, 1], [], []>} : vector<128x128xbf16>, vector<128x128xbf16>, vector<128x128xf32> -> vector<128x128xf32>
    %c0_3 = arith.constant 0 : index
    %c0_4 = arith.constant 0 : index
    %4 = vector.load %arg3[%c0_3, %c0_4] : memref<1x128xf32, #tpu.memory_space<vmem>>, vector<1x128xf32>
    %5 = vector.broadcast %4 : vector<1x128xf32> to vector<128x128xf32>
    %6 = arith.addf %3, %5 : vector<128x128xf32>
    %cst_5 = arith.constant 5.000000e-01 : f32
    %7 = vector.broadcast %cst_5 : f32 to vector<128x128xf32>
    %8 = arith.mulf %7, %6 : vector<128x128xf32>
    %9 = math.tanh %8 : vector<128x128xf32>
    %cst_6 = arith.constant 5.000000e-01 : f32
    %10 = vector.broadcast %cst_6 : f32 to vector<128x128xf32>
    %11 = arith.mulf %10, %9 : vector<128x128xf32>
    %cst_7 = arith.constant 5.000000e-01 : f32
    %12 = vector.broadcast %cst_7 : f32 to vector<128x128xf32>
    %13 = arith.addf %11, %12 : vector<128x128xf32>
    %14 = arith.mulf %6, %13 : vector<128x128xf32>
    %15 = arith.truncf %14 : vector<128x128xf32> to vector<128x128xbf16>
    %c0_8 = arith.constant 0 : index
    %c0_9 = arith.constant 0 : index
    %16 = vector.load %arg4[%c0_8, %c0_9] : memref<128x128xbf16, #tpu.memory_space<vmem>>, vector<128x128xbf16>
    %cst_10 = arith.constant dense<0.000000e+00> : vector<128x128xf32>
    %17 = tpu.matmul %15, %16, %cst_10 {dimension_numbers = #tpu.dot_dimension_numbers<[1], [0], [0], [1], [0, 0, 1, 1], [], []>} : vector<128x128xbf16>, vector<128x128xbf16>, vector<128x128xf32> -> vector<128x128xf32>
    %c0_11 = arith.constant 0 : index
    %c0_12 = arith.constant 0 : index
    %18 = vector.load %arg5[%c0_11, %c0_12] : memref<1x128xf32, #tpu.memory_space<vmem>>, vector<1x128xf32>
    %19 = vector.broadcast %18 : vector<1x128xf32> to vector<128x128xf32>
    %20 = arith.addf %17, %19 : vector<128x128xf32>
    %21 = arith.addf %20, %0 : vector<128x128xf32>
    %cst_13 = arith.constant 5.000000e-01 : f32
    %22 = vector.broadcast %cst_13 : f32 to vector<128x128xf32>
    %23 = arith.mulf %22, %21 : vector<128x128xf32>
    %24 = math.tanh %23 : vector<128x128xf32>
    %cst_14 = arith.constant 5.000000e-01 : f32
    %25 = vector.broadcast %cst_14 : f32 to vector<128x128xf32>
    %26 = arith.mulf %25, %24 : vector<128x128xf32>
    %cst_15 = arith.constant 5.000000e-01 : f32
    %27 = vector.broadcast %cst_15 : f32 to vector<128x128xf32>
    %28 = arith.addf %26, %27 : vector<128x128xf32>
    %29 = arith.mulf %21, %28 : vector<128x128xf32>
    %c0_16 = arith.constant 0 : index
    %c0_17 = arith.constant 0 : index
    %30 = vector.load %arg6[%c0_16, %c0_17] : memref<128x128xf32, #tpu.memory_space<vmem>>, vector<128x128xf32>
    tpu.vector_store %arg6[%c0_16, %c0_17], %29 {strides = array<i32>} : memref<128x128xf32, #tpu.memory_space<vmem>>, vector<128x128xf32>,
    return
  }
  func.func @transform_0(%arg0: i32) -> (i32, i32) {
    %c0_i32 = arith.constant 0 : i32
    %c0_i32_0 = arith.constant 0 : i32
    return %arg0, %c0_i32 : i32, i32
  }
  func.func @transform_1(%arg0: i32) -> (i32, i32) {
    %c0_i32 = arith.constant 0 : i32
    %c0_i32_0 = arith.constant 0 : i32
    %c0_i32_1 = arith.constant 0 : i32
    return %c0_i32, %c0_i32_0 : i32, i32
  }
  func.func @transform_2(%arg0: i32) -> (i32, i32) {
    %c0_i32 = arith.constant 0 : i32
    %c0_i32_0 = arith.constant 0 : i32
    %c0_i32_1 = arith.constant 0 : i32
    return %c0_i32, %c0_i32_0 : i32, i32
  }
  func.func @transform_3(%arg0: i32) -> (i32, i32) {
    %c0_i32 = arith.constant 0 : i32
    %c0_i32_0 = arith.constant 0 : i32
    %c0_i32_1 = arith.constant 0 : i32
    return %c0_i32, %c0_i32_0 : i32, i32
  }
  func.func @transform_4(%arg0: i32) -> (i32, i32) {
    %c0_i32 = arith.constant 0 : i32
    %c0_i32_0 = arith.constant 0 : i32
    %c0_i32_1 = arith.constant 0 : i32
    return %c0_i32, %c0_i32_0 : i32, i32
  }
  func.func @transform_5(%arg0: i32) -> (i32, i32) {
    %c0_i32 = arith.constant 0 : i32
    %c0_i32_0 = arith.constant 0 : i32
    return %arg0, %c0_i32 : i32, i32
  }
}

</mosaic_0001>

<llo_original>
// kernel: tpu_custom_call.1
$region0: #{tpu_custom_call.1}
  #allocation0 [shape = 'u32[]', space=smem, size = 0x4, offset = 0x4, fixed_abs, tag = 'smem constant byte address 0x4 - core index']
  #allocation1 [shape = 'u32[72,128]{1,0:T(1,128)}', space=vmem, size = 0x9000, scoped, tag = 'internal scratch']
  %s0 = inlined_call_operand.hbm [shape: f32[128,128], index: 0, kind: input, shape index: {}]
  %s1 = inlined_call_operand.hbm [shape: bf16[128,128], index: 1, kind: input, shape index: {}]
  %s2 = inlined_call_operand.vmem [shape: f32[1,128], index: 2, kind: input, shape index: {}]
  %s3 = inlined_call_operand.hbm [shape: bf16[128,128], index: 3, kind: input, shape index: {}]
  %s4 = inlined_call_operand.vmem [shape: f32[1,128], index: 4, kind: input, shape index: {}]
  %s5 = inlined_call_operand.hbm [shape: f32[128,128], index: 5, kind: output, shape index: {}]
  %s6 = sld [smem:[#allocation0]]
  $region42: #{tpu_custom_call.1} parent=0
    _
  %s8 = ssub.s32 1, %s6
  %s9 = scalar_select 0, %s8, %s6
  $region1: #{tpu_custom_call.1} parent=0
    #allocation2 [shape = 'u8[65536]{0}', space=vmem, size = 0x10000, scoped, tag = 'input window, operand 0, single buffered']
    #allocation3 [shape = 's32[1]{0}', space=sflag, size = 0x4, scoped, tag = 'scoped memory for tpu_custom_call.1']
    #allocation4 [shape = 's32[1]{0}', space=sflag, size = 0x4, scoped, tag = 'scoped memory for tpu_custom_call.1']
    #allocation5 [shape = 'u8[32768]{0}', space=vmem, size = 0x8000, scoped, tag = 'input window, operand 1, single buffered']
    #allocation6 [shape = 's32[1]{0}', space=sflag, size = 0x4, scoped, tag = 'scoped memory for tpu_custom_call.1']
    #allocation7 [shape = 'u8[32768]{0}', space=vmem, size = 0x8000, scoped, tag = 'input window, operand 3, single buffered']
    #allocation8 [shape = 'u8[65536]{0}', space=vmem, size = 0x10000, scoped, tag = 'output window, operand 0, single buffered']
    %10 = vsyncpa [#allocation3], 0
    %11 = vsyncpa [#allocation6], 0
    %12 = vsyncpa [#allocation4], 0
    // Predicated region
    $region2: #{tpu_custom_call.1} parent=1 // pred_check
      _
    $region3: #{tpu_custom_call.1} parent=1 // pred_check_branch
      %14 = sbr.rel (0) target = $region5
    $region4: #{tpu_custom_call.1} parent=1 // pred_region
      %16 = vsyncadd [#allocation3], 0
      %s17 = sshll.u32 %s0, 4
      %s18 = int_to_ptr.hbm [resolvable:$true] %s17
      %s19 = sshll.u32 [#allocation2], 4
      %s20 = int_to_ptr.vmem [resolvable:$true] %s19
      %25 = dma.hbm_to_vmem [thread:$0]  %s18, 2048, %s20, [#allocation3], 128, 128, 8
    $region5: #{tpu_custom_call.1} parent=1 // pred_fallthru
      _
    // Predicated region
    $region6: #{tpu_custom_call.1} parent=1 // pred_check
      _
    $region7: #{tpu_custom_call.1} parent=1 // pred_check_branch
      %27 = sbr.rel (0) target = $region9
    $region8: #{tpu_custom_call.1} parent=1 // pred_region
      %29 = vsyncadd [#allocation6], 0
      %s30 = sshll.u32 %s1, 4
      %s31 = int_to_ptr.hbm [resolvable:$true] %s30
      %s32 = sshll.u32 [#allocation5], 4
      %s33 = int_to_ptr.vmem [resolvable:$true] %s32
      %38 = dma.hbm_to_vmem [thread:$0]  %s31, 1024, %s33, [#allocation6], 64, 64, 4
    $region9: #{tpu_custom_call.1} parent=1 // pred_fallthru
      _
    // Predicated region
    $region10: #{tpu_custom_call.1} parent=1 // pred_check
      _
    $region11: #{tpu_custom_call.1} parent=1 // pred_check_branch
      %40 = sbr.rel (0) target = $region13
    $region12: #{tpu_custom_call.1} parent=1 // pred_region
      _
    $region13: #{tpu_custom_call.1} parent=1 // pred_fallthru
      _
    // Predicated region
    $region14: #{tpu_custom_call.1} parent=1 // pred_check
      _
    $region15: #{tpu_custom_call.1} parent=1 // pred_check_branch
      %42 = sbr.rel (0) target = $region17
    $region16: #{tpu_custom_call.1} parent=1 // pred_region
      %44 = vsyncadd [#allocation6], 0
      %s45 = sshll.u32 %s3, 4
      %s46 = int_to_ptr.hbm [resolvable:$true] %s45
      %s47 = sshll.u32 [#allocation7], 4
      %s48 = int_to_ptr.vmem [resolvable:$true] %s47
      %53 = dma.hbm_to_vmem [thread:$0]  %s46, 1024, %s48, [#allocation6], 64, 64, 4
    $region17: #{tpu_custom_call.1} parent=1 // pred_fallthru
      _
    // Predicated region
    $region18: #{tpu_custom_call.1} parent=1 // pred_check
      _
    $region19: #{tpu_custom_call.1} parent=1 // pred_check_branch
      %55 = sbr.rel (0) target = $region21
    $region20: #{tpu_custom_call.1} parent=1 // pred_region
      _
    $region21: #{tpu_custom_call.1} parent=1 // pred_fallthru
      _
    // Predicated region
    $region22: #{tpu_custom_call.1} parent=1 // pred_check
      _
    $region23: #{tpu_custom_call.1} parent=1 // pred_check_branch
      %57 = sbr.rel (0) target = $region25
    $region24: #{tpu_custom_call.1} parent=1 // pred_region
      %59 = dma.done [#allocation3], 2048
    $region25: #{tpu_custom_call.1} parent=1 // pred_fallthru
      _
    // Predicated region
    $region26: #{tpu_custom_call.1} parent=1 // pred_check
      _
    $region27: #{tpu_custom_call.1} parent=1 // pred_check_branch
      %61 = sbr.rel (0) target = $region29
    $region28: #{tpu_custom_call.1} parent=1 // pred_region
      %63 = dma.done [#allocation6], 1024
    $region29: #{tpu_custom_call.1} parent=1 // pred_fallthru
      _
    // Predicated region
    $region30: #{tpu_custom_call.1} parent=1 // pred_check
      _
    $region31: #{tpu_custom_call.1} parent=1 // pred_check_branch
      %65 = sbr.rel (0) target = $region33
    $region32: #{tpu_custom_call.1} parent=1 // pred_region
      %67 = dma.done [#allocation6], 1024
    $region33: #{tpu_custom_call.1} parent=1 // pred_fallthru
      _
    %v68 = vld [vmem:[#allocation2] sm:$0xff]
    %v69 = vld [vmem:[#allocation2 + $0x8] sm:$0xff]
    %v70 = vld [vmem:[#allocation2 + $0x10] sm:$0xff]
    %v71 = vld [vmem:[#allocation2 + $0x18] sm:$0xff]
    %v72 = vld [vmem:[#allocation2 + $0x20] sm:$0xff]
    %v73 = vld [vmem:[#allocation2 + $0x28] sm:$0xff]
    %v74 = vld [vmem:[#allocation2 + $0x30] sm:$0xff]
    %v75 = vld [vmem:[#allocation2 + $0x38] sm:$0xff]
    %v76 = vld [vmem:[#allocation2 + $0x40] sm:$0xff]
    %v77 = vld [vmem:[#allocation2 + $0x48] sm:$0xff]
    %v78 = vld [vmem:[#allocation2 + $0x50] sm:$0xff]
    %v79 = vld [vmem:[#allocation2 + $0x58] sm:$0xff]
    %v80 = vld [vmem:[#allocation2 + $0x60] sm:$0xff]
    %v81 = vld [vmem:[#allocation2 + $0x68] sm:$0xff]
    %v82 = vld [vmem:[#allocation2 + $0x70] sm:$0xff]
    %v83 = vld [vmem:[#allocation2 + $0x78] sm:$0xff]
    %v84 = vpack.c.bf16 %v69, %v68
    %v85 = vpack.c.bf16 %v71, %v70
    %v86 = vpack.c.bf16 %v73, %v72
    %v87 = vpack.c.bf16 %v75, %v74
    %v88 = vpack.c.bf16 %v77, %v76
    %v89 = vpack.c.bf16 %v79, %v78
    %v90 = vpack.c.bf16 %v81, %v80
    %v91 = vpack.c.bf16 %v83, %v82
    %v92 = vld [vmem:[#allocation5] sm:$0xf]
    %v93 = vld [vmem:[#allocation5 + $0x4] sm:$0xf]
    %v94 = vld [vmem:[#allocation5 + $0x8] sm:$0xf]
    %v95 = vld [vmem:[#allocation5 + $0xc] sm:$0xf]
    %v96 = vld [vmem:[#allocation5 + $0x10] sm:$0xf]
    %v97 = vld [vmem:[#allocation5 + $0x14] sm:$0xf]
    %v98 = vld [vmem:[#allocation5 + $0x18] sm:$0xf]
    %v99 = vld [vmem:[#allocation5 + $0x1c] sm:$0xf]
    %v100 = vld [vmem:[#allocation5 + $0x20] sm:$0xf]
    %v101 = vld [vmem:[#allocation5 + $0x24] sm:$0xf]
    %v102 = vld [vmem:[#allocation5 + $0x28] sm:$0xf]
    %v103 = vld [vmem:[#allocation5 + $0x2c] sm:$0xf]
    %v104 = vld [vmem:[#allocation5 + $0x30] sm:$0xf]
    %v105 = vld [vmem:[#allocation5 + $0x34] sm:$0xf]
    %v106 = vld [vmem:[#allocation5 + $0x38] sm:$0xf]
    %v107 = vld [vmem:[#allocation5 + $0x3c] sm:$0xf]
    %v108 = vld [vmem:[%s2] sm:$0x1]
    %v110 = vperm.slane %v108, 0
    %v128 = vunpack.c.l.b16 %v92
    %v129 = vunpack.c.l.b16 %v93
    %v130 = vunpack.c.l.b16 %v94
    %v131 = vunpack.c.l.b16 %v95
    %v132 = vunpack.c.l.b16 %v96
    %v133 = vunpack.c.l.b16 %v97
    %v134 = vunpack.c.l.b16 %v98
    %v135 = vunpack.c.l.b16 %v99
    %v136 = vunpack.c.l.b16 %v100
    %v137 = vunpack.c.l.b16 %v101
    %v138 = vunpack.c.l.b16 %v102
    %v139 = vunpack.c.l.b16 %v103
    %v140 = vunpack.c.l.b16 %v104
    %v141 = vunpack.c.l.b16 %v105
    %v142 = vunpack.c.l.b16 %v106
    %v143 = vunpack.c.l.b16 %v107
    %v144 = vpack.c.b16 %v129, %v128
    %v145 = vpack.c.b16 %v131, %v130
    %v146 = vpack.c.b16 %v133, %v132
    %v147 = vpack.c.b16 %v135, %v134
    %v148 = vpack.c.b16 %v137, %v136
    %v149 = vpack.c.b16 %v139, %v138
    %v150 = vpack.c.b16 %v141, %v140
    %v151 = vpack.c.b16 %v143, %v142
    %160 = vmatpush.bf16.msra.mxu0 %v151
    %161 = vmatpush.bf16.msra.mxu0 %v150
    %162 = vmatpush.bf16.msra.mxu0 %v149
    %163 = vmatpush.bf16.msra.mxu0 %v148
    %164 = vmatpush.bf16.msra.mxu0 %v147
    %165 = vmatpush.bf16.msra.mxu0 %v146
    %166 = vmatpush.bf16.msra.mxu0 %v145
    %167 = vmatpush.bf16.msra.mxu0 %v144
    %168 = vmatmul.bf16.gmra.mxu0 %v84
    %v169 = vpop.f32.mrf.mxu0
    %v170 = vadd.f32 %v110, %v169
    %v171 = vpop.f32.mrf.mxu0
    %v172 = vadd.f32 %v110, %v171
    %173 = vmatmul.bf16.gmra.mxu0 %v85
    %v174 = vpop.f32.mrf.mxu0
    %v175 = vadd.f32 %v110, %v174
    %v176 = vpop.f32.mrf.mxu0
    %v177 = vadd.f32 %v110, %v176
    %178 = vmatmul.bf16.gmra.mxu0 %v86
    %v179 = vpop.f32.mrf.mxu0
    %v180 = vadd.f32 %v110, %v179
    %v181 = vpop.f32.mrf.mxu0
    %v182 = vadd.f32 %v110, %v181
    %183 = vmatmul.bf16.gmra.mxu0 %v87
    %v184 = vpop.f32.mrf.mxu0
    %v185 = vadd.f32 %v110, %v184
    %v186 = vpop.f32.mrf.mxu0
    %v187 = vadd.f32 %v110, %v186
    %188 = vmatmul.bf16.gmra.mxu0 %v88
    %v189 = vpop.f32.mrf.mxu0
    %v190 = vadd.f32 %v110, %v189
    %v191 = vpop.f32.mrf.mxu0
    %v192 = vadd.f32 %v110, %v191
    %193 = vmatmul.bf16.gmra.mxu0 %v89
    %v194 = vpop.f32.mrf.mxu0
    %v195 = vadd.f32 %v110, %v194
    %v196 = vpop.f32.mrf.mxu0
    %v197 = vadd.f32 %v110, %v196
    %198 = vmatmul.bf16.gmra.mxu0 %v90
    %v199 = vpop.f32.mrf.mxu0
    %v200 = vadd.f32 %v110, %v199
    %v201 = vpop.f32.mrf.mxu0
    %v202 = vadd.f32 %v110, %v201
    %203 = vmatmul.bf16.gmra.mxu0 %v91
    %v204 = vpop.f32.mrf.mxu0
    %v205 = vadd.f32 %v110, %v204
    %v206 = vpop.f32.mrf.mxu0
    %v207 = vadd.f32 %v110, %v206
    %208 = vdwg.mxu0
    %v209 = vmul.f32 %v170, 0.5
    %v210 = vmul.f32 %v172, 0.5
    %v211 = vmul.f32 %v175, 0.5
    %v212 = vmul.f32 %v177, 0.5
    %v213 = vmul.f32 %v180, 0.5
    %v214 = vmul.f32 %v182, 0.5
    %v215 = vmul.f32 %v185, 0.5
    %v216 = vmul.f32 %v187, 0.5
    %v217 = vmul.f32 %v190, 0.5
    %v218 = vmul.f32 %v192, 0.5
    %v219 = vmul.f32 %v195, 0.5
    %v220 = vmul.f32 %v197, 0.5
    %v221 = vmul.f32 %v200, 0.5
    %v222 = vmul.f32 %v202, 0.5
    %v223 = vmul.f32 %v205, 0.5
    %v224 = vmul.f32 %v207, 0.5
    %v225 = vtanh.pop %v209
    %v226 = vtanh.pop %v210
    %v227 = vtanh.pop %v211
    %v228 = vtanh.pop %v212
    %v229 = vtanh.pop %v213
    %v230 = vtanh.pop %v214
    %v231 = vtanh.pop %v215
    %v232 = vtanh.pop %v216
    %v233 = vtanh.pop %v217
    %v234 = vtanh.pop %v218
    %v235 = vtanh.pop %v219
    %v236 = vtanh.pop %v220
    %v237 = vtanh.pop %v221
    %v238 = vtanh.pop %v222
    %v239 = vtanh.pop %v223
    %v240 = vtanh.pop %v224
    %v241 = vmul.f32 %v225, 0.5
    %v242 = vmul.f32 %v226, 0.5
    %v243 = vmul.f32 %v227, 0.5
    %v244 = vmul.f32 %v228, 0.5
    %v245 = vmul.f32 %v229, 0.5
    %v246 = vmul.f32 %v230, 0.5
    %v247 = vmul.f32 %v231, 0.5
    %v248 = vmul.f32 %v232, 0.5
    %v249 = vmul.f32 %v233, 0.5
    %v250 = vmul.f32 %v234, 0.5
    %v251 = vmul.f32 %v235, 0.5
    %v252 = vmul.f32 %v236, 0.5
    %v253 = vmul.f32 %v237, 0.5
    %v254 = vmul.f32 %v238, 0.5
    %v255 = vmul.f32 %v239, 0.5
    %v256 = vmul.f32 %v240, 0.5
    %v257 = vadd.f32 %v241, 0.5
    %v258 = vadd.f32 %v242, 0.5
    %v259 = vadd.f32 %v243, 0.5
    %v260 = vadd.f32 %v244, 0.5
    %v261 = vadd.f32 %v245, 0.5
    %v262 = vadd.f32 %v246, 0.5
    %v263 = vadd.f32 %v247, 0.5
    %v264 = vadd.f32 %v248, 0.5
    %v265 = vadd.f32 %v249, 0.5
    %v266 = vadd.f32 %v250, 0.5
    %v267 = vadd.f32 %v251, 0.5
    %v268 = vadd.f32 %v252, 0.5
    %v269 = vadd.f32 %v253, 0.5
    %v270 = vadd.f32 %v254, 0.5
    %v271 = vadd.f32 %v255, 0.5
    %v272 = vadd.f32 %v256, 0.5
    %v273 = vmul.f32 %v170, %v257
    %v274 = vmul.f32 %v172, %v258
    %v275 = vmul.f32 %v175, %v259
    %v276 = vmul.f32 %v177, %v260
    %v277 = vmul.f32 %v180, %v261
    %v278 = vmul.f32 %v182, %v262
    %v279 = vmul.f32 %v185, %v263
    %v280 = vmul.f32 %v187, %v264
    %v281 = vmul.f32 %v190, %v265
    %v282 = vmul.f32 %v192, %v266
    %v283 = vmul.f32 %v195, %v267
    %v284 = vmul.f32 %v197, %v268
    %v285 = vmul.f32 %v200, %v269
    %v286 = vmul.f32 %v202, %v270
    %v287 = vmul.f32 %v205, %v271
    %v288 = vmul.f32 %v207, %v272
    %v289 = vpack.c.bf16 %v274, %v273
    %v290 = vpack.c.bf16 %v276, %v275
    %v291 = vpack.c.bf16 %v278, %v277
    %v292 = vpack.c.bf16 %v280, %v279
    %v293 = vpack.c.bf16 %v282, %v281
    %v294 = vpack.c.bf16 %v284, %v283
    %v295 = vpack.c.bf16 %v286, %v285
    %v296 = vpack.c.bf16 %v288, %v287
    %v297 = vld [vmem:[#allocation7] sm:$0xf]
    %v298 = vld [vmem:[#allocation7 + $0x4] sm:$0xf]
    %v299 = vld [vmem:[#allocation7 + $0x8] sm:$0xf]
    %v300 = vld [vmem:[#allocation7 + $0xc] sm:$0xf]
    %v301 = vld [vmem:[#allocation7 + $0x10] sm:$0xf]
    %v302 = vld [vmem:[#allocation7 + $0x14] sm:$0xf]
    %v303 = vld [vmem:[#allocation7 + $0x18] sm:$0xf]
    %v304 = vld [vmem:[#allocation7 + $0x1c] sm:$0xf]
    %v305 = vld [vmem:[#allocation7 + $0x20] sm:$0xf]
    %v306 = vld [vmem:[#allocation7 + $0x24] sm:$0xf]
    %v307 = vld [vmem:[#allocation7 + $0x28] sm:$0xf]
    %v308 = vld [vmem:[#allocation7 + $0x2c] sm:$0xf]
    %v309 = vld [vmem:[#allocation7 + $0x30] sm:$0xf]
    %v310 = vld [vmem:[#allocation7 + $0x34] sm:$0xf]
    %v311 = vld [vmem:[#allocation7 + $0x38] sm:$0xf]
    %v312 = vld [vmem:[#allocation7 + $0x3c] sm:$0xf]
    %v313 = vld [vmem:[%s4] sm:$0x1]
    %v315 = vperm.slane %v313, 0
    %v333 = vunpack.c.l.b16 %v297
    %v334 = vunpack.c.l.b16 %v298
    %v335 = vunpack.c.l.b16 %v299
    %v336 = vunpack.c.l.b16 %v300
    %v337 = vunpack.c.l.b16 %v301
    %v338 = vunpack.c.l.b16 %v302
    %v339 = vunpack.c.l.b16 %v303
    %v340 = vunpack.c.l.b16 %v304
    %v341 = vunpack.c.l.b16 %v305
    %v342 = vunpack.c.l.b16 %v306
    %v343 = vunpack.c.l.b16 %v307
    %v344 = vunpack.c.l.b16 %v308
    %v345 = vunpack.c.l.b16 %v309
    %v346 = vunpack.c.l.b16 %v310
    %v347 = vunpack.c.l.b16 %v311
    %v348 = vunpack.c.l.b16 %v312
    %v349 = vpack.c.b16 %v334, %v333
    %v350 = vpack.c.b16 %v336, %v335
    %v351 = vpack.c.b16 %v338, %v337
    %v352 = vpack.c.b16 %v340, %v339
    %v353 = vpack.c.b16 %v342, %v341
    %v354 = vpack.c.b16 %v344, %v343
    %v355 = vpack.c.b16 %v346, %v345
    %v356 = vpack.c.b16 %v348, %v347
    %365 = vmatpush.bf16.msra.mxu0 %v356
    %366 = vmatpush.bf16.msra.mxu0 %v355
    %367 = vmatpush.bf16.msra.mxu0 %v354
    %368 = vmatpush.bf16.msra.mxu0 %v353
    %369 = vmatpush.bf16.msra.mxu0 %v352
    %370 = vmatpush.bf16.msra.mxu0 %v351
    %371 = vmatpush.bf16.msra.mxu0 %v350
    %372 = vmatpush.bf16.msra.mxu0 %v349
    %373 = vmatmul.bf16.gmra.mxu0 %v289
    %v374 = vpop.f32.mrf.mxu0
    %v375 = vadd.f32 %v315, %v374
    %v376 = vpop.f32.mrf.mxu0
    %v377 = vadd.f32 %v315, %v376
    %378 = vmatmul.bf16.gmra.mxu0 %v290
    %v379 = vpop.f32.mrf.mxu0
    %v380 = vadd.f32 %v315, %v379
    %v381 = vpop.f32.mrf.mxu0
    %v382 = vadd.f32 %v315, %v381
    %383 = vmatmul.bf16.gmra.mxu0 %v291
    %v384 = vpop.f32.mrf.mxu0
    %v385 = vadd.f32 %v315, %v384
    %v386 = vpop.f32.mrf.mxu0
    %v387 = vadd.f32 %v315, %v386
    %388 = vmatmul.bf16.gmra.mxu0 %v292
    %v389 = vpop.f32.mrf.mxu0
    %v390 = vadd.f32 %v315, %v389
    %v391 = vpop.f32.mrf.mxu0
    %v392 = vadd.f32 %v315, %v391
    %393 = vmatmul.bf16.gmra.mxu0 %v293
    %v394 = vpop.f32.mrf.mxu0
    %v395 = vadd.f32 %v315, %v394
    %v396 = vpop.f32.mrf.mxu0
    %v397 = vadd.f32 %v315, %v396
    %398 = vmatmul.bf16.gmra.mxu0 %v294
    %v399 = vpop.f32.mrf.mxu0
    %v400 = vadd.f32 %v315, %v399
    %v401 = vpop.f32.mrf.mxu0
    %v402 = vadd.f32 %v315, %v401
    %403 = vmatmul.bf16.gmra.mxu0 %v295
    %v404 = vpop.f32.mrf.mxu0
    %v405 = vadd.f32 %v315, %v404
    %v406 = vpop.f32.mrf.mxu0
    %v407 = vadd.f32 %v315, %v406
    %408 = vmatmul.bf16.gmra.mxu0 %v296
    %v409 = vpop.f32.mrf.mxu0
    %v410 = vadd.f32 %v315, %v409
    %v411 = vpop.f32.mrf.mxu0
    %v412 = vadd.f32 %v315, %v411
    %413 = vdwg.mxu0
    %v414 = vadd.f32 %v375, %v68
    %v415 = vadd.f32 %v377, %v69
    %v416 = vadd.f32 %v380, %v70
    %v417 = vadd.f32 %v382, %v71
    %v418 = vadd.f32 %v385, %v72
    %v419 = vadd.f32 %v387, %v73
    %v420 = vadd.f32 %v390, %v74
    %v421 = vadd.f32 %v392, %v75
    %v422 = vadd.f32 %v395, %v76
    %v423 = vadd.f32 %v397, %v77
    %v424 = vadd.f32 %v400, %v78
    %v425 = vadd.f32 %v402, %v79
    %v426 = vadd.f32 %v405, %v80
    %v427 = vadd.f32 %v407, %v81
    %v428 = vadd.f32 %v410, %v82
    %v429 = vadd.f32 %v412, %v83
    %v430 = vmul.f32 %v414, 0.5
    %v431 = vmul.f32 %v415, 0.5
    %v432 = vmul.f32 %v416, 0.5
    %v433 = vmul.f32 %v417, 0.5
    %v434 = vmul.f32 %v418, 0.5
    %v435 = vmul.f32 %v419, 0.5
    %v436 = vmul.f32 %v420, 0.5
    %v437 = vmul.f32 %v421, 0.5
    %v438 = vmul.f32 %v422, 0.5
    %v439 = vmul.f32 %v423, 0.5
    %v440 = vmul.f32 %v424, 0.5
    %v441 = vmul.f32 %v425, 0.5
    %v442 = vmul.f32 %v426, 0.5
    %v443 = vmul.f32 %v427, 0.5
    %v444 = vmul.f32 %v428, 0.5
    %v445 = vmul.f32 %v429, 0.5
    %v446 = vtanh.pop %v430
    %v447 = vtanh.pop %v431
    %v448 = vtanh.pop %v432
    %v449 = vtanh.pop %v433
    %v450 = vtanh.pop %v434
    %v451 = vtanh.pop %v435
    %v452 = vtanh.pop %v436
    %v453 = vtanh.pop %v437
    %v454 = vtanh.pop %v438
    %v455 = vtanh.pop %v439
    %v456 = vtanh.pop %v440
    %v457 = vtanh.pop %v441
    %v458 = vtanh.pop %v442
    %v459 = vtanh.pop %v443
    %v460 = vtanh.pop %v444
    %v461 = vtanh.pop %v445
    %v462 = vmul.f32 %v446, 0.5
    %v463 = vmul.f32 %v447, 0.5
    %v464 = vmul.f32 %v448, 0.5
    %v465 = vmul.f32 %v449, 0.5
    %v466 = vmul.f32 %v450, 0.5
    %v467 = vmul.f32 %v451, 0.5
    %v468 = vmul.f32 %v452, 0.5
    %v469 = vmul.f32 %v453, 0.5
    %v470 = vmul.f32 %v454, 0.5
    %v471 = vmul.f32 %v455, 0.5
    %v472 = vmul.f32 %v456, 0.5
    %v473 = vmul.f32 %v457, 0.5
    %v474 = vmul.f32 %v458, 0.5
    %v475 = vmul.f32 %v459, 0.5
    %v476 = vmul.f32 %v460, 0.5
    %v477 = vmul.f32 %v461, 0.5
    %v478 = vadd.f32 %v462, 0.5
    %v479 = vadd.f32 %v463, 0.5
    %v480 = vadd.f32 %v464, 0.5
    %v481 = vadd.f32 %v465, 0.5
    %v482 = vadd.f32 %v466, 0.5
    %v483 = vadd.f32 %v467, 0.5
    %v484 = vadd.f32 %v468, 0.5
    %v485 = vadd.f32 %v469, 0.5
    %v486 = vadd.f32 %v470, 0.5
    %v487 = vadd.f32 %v471, 0.5
    %v488 = vadd.f32 %v472, 0.5
    %v489 = vadd.f32 %v473, 0.5
    %v490 = vadd.f32 %v474, 0.5
    %v491 = vadd.f32 %v475, 0.5
    %v492 = vadd.f32 %v476, 0.5
    %v493 = vadd.f32 %v477, 0.5
    %v494 = vmul.f32 %v414, %v478
    %v495 = vmul.f32 %v415, %v479
    %v496 = vmul.f32 %v416, %v480
    %v497 = vmul.f32 %v417, %v481
    %v498 = vmul.f32 %v418, %v482
    %v499 = vmul.f32 %v419, %v483
    %v500 = vmul.f32 %v420, %v484
    %v501 = vmul.f32 %v421, %v485
    %v502 = vmul.f32 %v422, %v486
    %v503 = vmul.f32 %v423, %v487
    %v504 = vmul.f32 %v424, %v488
    %v505 = vmul.f32 %v425, %v489
    %v506 = vmul.f32 %v426, %v490
    %v507 = vmul.f32 %v427, %v491
    %v508 = vmul.f32 %v428, %v492
    %v509 = vmul.f32 %v429, %v493
    %510 = vst [vmem:[#allocation8] sm:$0xff] %v494
    %511 = vst [vmem:[#allocation8 + $0x8] sm:$0xff] %v495
    %512 = vst [vmem:[#allocation8 + $0x10] sm:$0xff] %v496
    %513 = vst [vmem:[#allocation8 + $0x18] sm:$0xff] %v497
    %514 = vst [vmem:[#allocation8 + $0x20] sm:$0xff] %v498
    %515 = vst [vmem:[#allocation8 + $0x28] sm:$0xff] %v499
    %516 = vst [vmem:[#allocation8 + $0x30] sm:$0xff] %v500
    %517 = vst [vmem:[#allocation8 + $0x38] sm:$0xff] %v501
    %518 = vst [vmem:[#allocation8 + $0x40] sm:$0xff] %v502
    %519 = vst [vmem:[#allocation8 + $0x48] sm:$0xff] %v503
    %520 = vst [vmem:[#allocation8 + $0x50] sm:$0xff] %v504
    %521 = vst [vmem:[#allocation8 + $0x58] sm:$0xff] %v505
    %522 = vst [vmem:[#allocation8 + $0x60] sm:$0xff] %v506
    %523 = vst [vmem:[#allocation8 + $0x68] sm:$0xff] %v507
    %524 = vst [vmem:[#allocation8 + $0x70] sm:$0xff] %v508
    %525 = vst [vmem:[#allocation8 + $0x78] sm:$0xff] %v509
    // Predicated region
    $region34: #{tpu_custom_call.1} parent=1 // pred_check
      _
    $region35: #{tpu_custom_call.1} parent=1 // pred_check_branch
      %527 = sbr.rel (0) target = $region37
    $region36: #{tpu_custom_call.1} parent=1 // pred_region
      %529 = vsyncadd [#allocation4], 0
      %s530 = sshll.u32 [#allocation8], 4
      %s531 = int_to_ptr.vmem [resolvable:$true] %s530
      %s532 = sshll.u32 %s5, 4
      %s533 = int_to_ptr.hbm [resolvable:$true] %s532
      %538 = dma.vmem_to_hbm [thread:$0]  %s531, 2048, %s533, [#allocation4], 128, 128, 8
    $region37: #{tpu_custom_call.1} parent=1 // pred_fallthru
      _
    // Predicated region
    $region38: #{tpu_custom_call.1} parent=1 // pred_check
      _
    $region39: #{tpu_custom_call.1} parent=1 // pred_check_branch
      %540 = sbr.rel (0) target = $region41
    $region40: #{tpu_custom_call.1} parent=1 // pred_region
      %542 = dma.done [#allocation4], 2048
    $region41: #{tpu_custom_call.1} parent=1 // pred_fallthru
      _
    %543 = vsyncpa [#allocation3], 1
    %544 = vsyncpa [#allocation6], 1
    %545 = vsyncpa [#allocation4], 1

</llo_original>
